<compile_context>
chip_gen: v5e
topology: v5e:2x2
jax: 0.10.0
libtpu: 0.0.40
codegen_flags: <defaults>
</compile_context>

<pallas_src>
import math

import jax
import jax.numpy as jnp
from jax.experimental import pallas as pl
from jax.experimental.pallas import tpu as pltpu


# ---------------------------------------------------------------------------
# Kernel
# ---------------------------------------------------------------------------
def _linear_cell_kernel(xh_ref, w_ref, b_ref, o_ref, acc_ref):
    k = pl.program_id(2)

    @pl.when(k == 0)
    def _init():
        acc_ref[...] = jnp.zeros_like(acc_ref)

    # Single fused MXU matmul over the packed (input ++ hidden) feature axis.
    acc_ref[...] += jnp.dot(
        xh_ref[...], w_ref[...], preferred_element_type=jnp.float32
    )

    @pl.when(k == pl.num_programs(2) - 1)
    def _finalize():
        # Bias is added ONCE, outside the accumulation path.
        o_ref[...] = (acc_ref[...] + b_ref[...]).astype(o_ref.dtype)


# ---------------------------------------------------------------------------
# Parameter packing (one-time, outside the hot path)
# ---------------------------------------------------------------------------
def _round_up(x, m):
    return (x + m - 1) // m * m


def pack_linear_cell_params(w_ih, b_ih, w_hh, b_hh):
    """Pack PyTorch-layout LinearCell params into a single lane-aligned
    weight matrix and a fused bias row.  Do this ONCE per parameter set.

    w_ih: (latent, input)  b_ih: (latent,)
    w_hh: (latent, latent) b_hh: (latent,)

    Returns:
      w_packed: (Kp, Np) f32, Kp = round_up(input+latent, 128),
                            Np = round_up(latent, 128), zero padded.
      bias:     (1, Np)  f32, zero padded.
      meta:     (input_size, latent_size) original sizes.
    """
    latent, input_size = w_ih.shape
    assert w_hh.shape == (latent, latent)
    k = input_size + latent

    w = jnp.concatenate(
        [w_ih.T.astype(jnp.float32), w_hh.T.astype(jnp.float32)], axis=0
    )  # (K, latent)
    bias = (b_ih + b_hh).astype(jnp.float32).reshape(1, latent)

    kp = _round_up(k, 128)
    np_ = _round_up(latent, 128)
    if (kp, np_) != w.shape:
        w = jnp.pad(w, ((0, kp - k), (0, np_ - latent)))
    if np_ != bias.shape[1]:
        bias = jnp.pad(bias, ((0, 0), (0, np_ - latent)))
    return w, bias, (input_size, latent)


# ---------------------------------------------------------------------------
# Pallas call wrapper
# ---------------------------------------------------------------------------
def _pick_tile(padded_dim, target, align):
    """Largest divisor of `padded_dim` that is a multiple of `align` and
    no larger than `target` (padded_dim and target are multiples of align)."""
    return max(math.gcd(padded_dim, target), align)


def linear_cell_packed(x, hidden, w_packed, bias, meta,
                       *, tm_target=256, tn_target=256, tk_target=512):
    """LinearCell forward with pre-packed params.

    x:        (B, input_size)
    hidden:   (B, latent_size)
    w_packed: (Kp, Np)   from pack_linear_cell_params
    bias:     (1, Np)
    returns   (B, latent_size), dtype of x.
    """
    input_size, latent = meta
    b = x.shape[0]
    assert x.shape == (b, input_size)
    assert hidden.shape == (b, latent)
    kp, np_ = w_packed.shape
    k = input_size + latent

    # Pack + pad the (small) activations per call.
    xh = jnp.concatenate([x, hidden], axis=1)               # (B, K)
    bp = _round_up(b, 8)
    if (bp, kp) != xh.shape:
        xh = jnp.pad(xh, ((0, bp - b), (0, kp - k)))

    tm = _pick_tile(bp, tm_target, 8)
    tn = _pick_tile(np_, tn_target, 128)
    tk = _pick_tile(kp, tk_target, 128)

    grid = (bp // tm, np_ // tn, kp // tk)

    out = pl.pallas_call(
        _linear_cell_kernel,
        out_shape=jax.ShapeDtypeStruct((bp, np_), x.dtype),
        grid_spec=pltpu.PrefetchScalarGridSpec(
            num_scalar_prefetch=0,
            grid=grid,
            in_specs=[
                pl.BlockSpec((tm, tk), lambda i, j, kk: (i, kk)),   # xh
                pl.BlockSpec((tk, tn), lambda i, j, kk: (kk, j)),   # W packed
                pl.BlockSpec((1, tn), lambda i, j, kk: (0, j)),     # fused bias
            ],
            out_specs=pl.BlockSpec((tm, tn), lambda i, j, kk: (i, j)),
            scratch_shapes=[pltpu.VMEM((tm, tn), jnp.float32)],
        ),
        compiler_params=pltpu.CompilerParams(
            dimension_semantics=("parallel", "parallel", "arbitrary"),
            vmem_limit_bytes=32 * 1024 * 1024,
        ),
    )(xh, w_packed, bias)

    return out[:b, :latent]


def linear_cell(x, hidden, w_ih, b_ih, w_hh, b_hh):
    """Convenience wrapper taking PyTorch-layout params directly.
    NOTE: packs/transposes weights on every call; for repeated use (e.g. a
    sequence loop) call pack_linear_cell_params() once and reuse its output.
    """
    w_packed, bias, meta = pack_linear_cell_params(w_ih, b_ih, w_hh, b_hh)
    return linear_cell_packed(x, hidden, w_packed, bias, meta)


def linear_cell_ref(x, hidden, w_ih, b_ih, w_hh, b_hh):
    # Pure-JAX reference matching PyTorch semantics exactly.
    return (x @ w_ih.T + b_ih) + (hidden @ w_hh.T + b_hh)


# TODO(synk): if the real model keeps latent~16 / batch~8, fuse this cell into
# the surrounding sequence scan inside a single kernel (weights resident in
# VMEM across timesteps) instead of paying per-pallas_call overhead.

if __name__ == "__main__":
    batch = 8
    input_size = 32
    latent_size = 16

    key = jax.random.PRNGKey(0)
    k_x, k_h, k_wih, k_bih, k_whh, k_bhh = jax.random.split(key, 6)

    x = jax.random.normal(k_x, (batch, input_size), dtype=jnp.float32)
    hidden = jax.random.normal(k_h, (batch, latent_size), dtype=jnp.float32)

    # nn.Linear default init: U(-1/sqrt(fan_in), +1/sqrt(fan_in)).
    bound_ih = 1.0 / jnp.sqrt(jnp.float32(input_size))
    bound_hh = 1.0 / jnp.sqrt(jnp.float32(latent_size))
    w_ih = jax.random.uniform(k_wih, (latent_size, input_size),
                              minval=-bound_ih, maxval=bound_ih,
                              dtype=jnp.float32)
    b_ih = jax.random.uniform(k_bih, (latent_size,),
                              minval=-bound_ih, maxval=bound_ih,
                              dtype=jnp.float32)
    w_hh = jax.random.uniform(k_whh, (latent_size, latent_size),
                              minval=-bound_hh, maxval=bound_hh,
                              dtype=jnp.float32)
    b_hh = jax.random.uniform(k_bhh, (latent_size,),
                              minval=-bound_hh, maxval=bound_hh,
                              dtype=jnp.float32)

    # One-time parameter packing, then a jitted hot-path call.
    w_packed, bias, meta = pack_linear_cell_params(w_ih, b_ih, w_hh, b_hh)
    fwd = jax.jit(linear_cell_packed, static_argnames=("meta",))
    out = fwd(x, hidden, w_packed, bias, meta)
    out = jax.block_until_ready(out)

    ref = linear_cell_ref(x, hidden, w_ih, b_ih, w_hh, b_hh)
    assert out.shape == (batch, latent_size)
    assert jnp.allclose(out, ref, atol=1e-5, rtol=1e-5)

    print("KERNEL_OK")
</pallas_src>

<mosaic_0001>
module attributes {stable_mosaic.version = 11 : i64} {
  func.func @_linear_cell_kernel(%arg0: i32, %arg1: i32, %arg2: i32, %arg3: memref<8x128xf32, #tpu.memory_space<vmem>>, %arg4: memref<128x128xf32, #tpu.memory_space<vmem>>, %arg5: memref<1x128xf32, #tpu.memory_space<vmem>>, %arg6: memref<8x128xf32, #tpu.memory_space<vmem>>, %arg7: memref<8x128xf32, #tpu.memory_space<vmem>>) attributes {dimension_semantics = [#tpu.dimension_semantics<parallel>, #tpu.dimension_semantics<parallel>, #tpu.dimension_semantics<arbitrary>], iteration_bounds = array<i64: 1, 1, 1>, scalar_prefetch = 0 : i64, scratch_operands = 1 : i64, tpu.core_type = #tpu.core_type<tc>, window_params = [{transform_indices = @transform_0, window_bounds = array<i64: 8, 128>}, {transform_indices = @transform_1, window_bounds = array<i64: 128, 128>}, {transform_indices = @transform_2, window_bounds = array<i64: 1, 128>}, {transform_indices = @transform_3, window_bounds = array<i64: 8, 128>}]} {
    %c0_i32 = arith.constant 0 : i32
    %0 = arith.cmpi eq, %arg2, %c0_i32 : i32
    %1 = arith.extui %0 : i1 to i32
    %c0_i32_0 = arith.constant 0 : i32
    %2 = arith.cmpi ne, %1, %c0_i32_0 : i32
    scf.if %2 {
      %cst_10 = arith.constant 0.000000e+00 : f32
      %12 = vector.broadcast %cst_10 : f32 to vector<8x128xf32>
      %c0_11 = arith.constant 0 : index
      %c0_12 = arith.constant 0 : index
      %13 = vector.load %arg7[%c0_11, %c0_12] : memref<8x128xf32, #tpu.memory_space<vmem>>, vector<8x128xf32>
      tpu.vector_store %arg7[%c0_11, %c0_12], %12 {strides = array<i32>} : memref<8x128xf32, #tpu.memory_space<vmem>>, vector<8x128xf32>,
    } else {
    }
    %c0 = arith.constant 0 : index
    %c0_1 = arith.constant 0 : index
    %3 = vector.load %arg7[%c0, %c0_1] : memref<8x128xf32, #tpu.memory_space<vmem>>, vector<8x128xf32>
    %c0_2 = arith.constant 0 : index
    %c0_3 = arith.constant 0 : index
    %4 = vector.load %arg3[%c0_2, %c0_3] : memref<8x128xf32, #tpu.memory_space<vmem>>, vector<8x128xf32>
    %c0_4 = arith.constant 0 : index
    %c0_5 = arith.constant 0 : index
    %5 = vector.load %arg4[%c0_4, %c0_5] : memref<128x128xf32, #tpu.memory_space<vmem>>, vector<128x128xf32>
    %cst = arith.constant dense<0.000000e+00> : vector<8x128xf32>
    %6 = tpu.matmul %4, %5, %cst {dimension_numbers = #tpu.dot_dimension_numbers<[1], [0], [0], [1], [0, 0, 1, 1], [], []>} : vector<8x128xf32>, vector<128x128xf32>, vector<8x128xf32> -> vector<8x128xf32>
    %7 = arith.addf %3, %6 : vector<8x128xf32>
    %c0_6 = arith.constant 0 : index
    %c0_7 = arith.constant 0 : index
    %8 = vector.load %arg7[%c0_6, %c0_7] : memref<8x128xf32, #tpu.memory_space<vmem>>, vector<8x128xf32>
    tpu.vector_store %arg7[%c0_6, %c0_7], %7 {strides = array<i32>} : memref<8x128xf32, #tpu.memory_space<vmem>>, vector<8x128xf32>,
    %c0_i32_8 = arith.constant 0 : i32
    %9 = arith.cmpi eq, %arg2, %c0_i32_8 : i32
    %10 = arith.extui %9 : i1 to i32
    %c0_i32_9 = arith.constant 0 : i32
    %11 = arith.cmpi ne, %10, %c0_i32_9 : i32
    scf.if %11 {
      %c0_10 = arith.constant 0 : index
      %c0_11 = arith.constant 0 : index
      %12 = vector.load %arg7[%c0_10, %c0_11] : memref<8x128xf32, #tpu.memory_space<vmem>>, vector<8x128xf32>
      %c0_12 = arith.constant 0 : index
      %c0_13 = arith.constant 0 : index
      %13 = vector.load %arg5[%c0_12, %c0_13] : memref<1x128xf32, #tpu.memory_space<vmem>>, vector<1x128xf32>
      %14 = vector.broadcast %13 : vector<1x128xf32> to vector<8x128xf32>
      %15 = arith.addf %12, %14 : vector<8x128xf32>
      %c0_14 = arith.constant 0 : index
      %c0_15 = arith.constant 0 : index
      %16 = vector.load %arg6[%c0_14, %c0_15] : memref<8x128xf32, #tpu.memory_space<vmem>>, vector<8x128xf32>
      tpu.vector_store %arg6[%c0_14, %c0_15], %15 {strides = array<i32>} : memref<8x128xf32, #tpu.memory_space<vmem>>, vector<8x128xf32>,
    } else {
    }
    return
  }
  func.func @transform_0(%arg0: i32, %arg1: i32, %arg2: i32) -> (i32, i32) {
    %c0_i32 = arith.constant 0 : i32
    return %arg0, %arg2 : i32, i32
  }
  func.func @transform_1(%arg0: i32, %arg1: i32, %arg2: i32) -> (i32, i32) {
    %c0_i32 = arith.constant 0 : i32
    return %arg2, %arg1 : i32, i32
  }
  func.func @transform_2(%arg0: i32, %arg1: i32, %arg2: i32) -> (i32, i32) {
    %c0_i32 = arith.constant 0 : i32
    %c0_i32_0 = arith.constant 0 : i32
    return %c0_i32, %arg1 : i32, i32
  }
  func.func @transform_3(%arg0: i32, %arg1: i32, %arg2: i32) -> (i32, i32) {
    %c0_i32 = arith.constant 0 : i32
    return %arg0, %arg1 : i32, i32
  }
}

</mosaic_0001>

<llo_original>
// kernel: linear_cell_packed.1
$region0: #{linear_cell_packed.1}
  #allocation0 [shape = 'u32[]', space=smem, size = 0x4, offset = 0x4, fixed_abs, tag = 'smem constant byte address 0x4 - core index']
  #allocation1 [shape = 'u32[72,128]{1,0:T(1,128)}', space=vmem, size = 0x9000, scoped, tag = 'internal scratch']
  #allocation2 [shape = 'f32[8,128]{1,0:T(8,128)}', space=vmem, size = 0x1000, scoped, tag = 'scratch operand']
  %s0 = inlined_call_operand.vmem [shape: f32[8,128], index: 0, kind: input, shape index: {}]
  %s1 = inlined_call_operand.hbm [shape: f32[128,128], index: 1, kind: input, shape index: {}]
  %s2 = inlined_call_operand.vmem [shape: f32[1,128], index: 2, kind: input, shape index: {}]
  %s3 = inlined_call_operand.hbm [shape: f32[8,128], index: 3, kind: output, shape index: {}]
  %s4 = sld [smem:[#allocation0]]
  $region34: #{linear_cell_packed.1} parent=0
    _
  %s6 = ssub.s32 1, %s4
  %s7 = scalar_select 0, %s6, %s4
  $region1: #{linear_cell_packed.1} parent=0
    #allocation3 [shape = 'u8[65536]{0}', space=vmem, size = 0x10000, scoped, tag = 'input window, operand 1, single buffered']
    #allocation4 [shape = 's32[1]{0}', space=sflag, size = 0x4, scoped, tag = 'scoped memory for linear_cell_packed.1']
    #allocation5 [shape = 's32[1]{0}', space=sflag, size = 0x4, scoped, tag = 'scoped memory for linear_cell_packed.1']
    #allocation6 [shape = 'u8[4096]{0}', space=vmem, size = 0x1000, scoped, tag = 'output window, operand 0, single buffered']
    %8 = vsyncpa [#allocation4], 0
    %9 = vsyncpa [#allocation5], 0
    // Predicated region
    $region2: #{linear_cell_packed.1} parent=1 // pred_check
      _
    $region3: #{linear_cell_packed.1} parent=1 // pred_check_branch
      %11 = sbr.rel (0) target = $region5
    $region4: #{linear_cell_packed.1} parent=1 // pred_region
      _
    $region5: #{linear_cell_packed.1} parent=1 // pred_fallthru
      _
    // Predicated region
    $region6: #{linear_cell_packed.1} parent=1 // pred_check
      _
    $region7: #{linear_cell_packed.1} parent=1 // pred_check_branch
      %13 = sbr.rel (0) target = $region9
    $region8: #{linear_cell_packed.1} parent=1 // pred_region
      %15 = vsyncadd [#allocation4], 0
      %s16 = sshll.u32 %s1, 4
      %s17 = int_to_ptr.hbm [resolvable:$true] %s16
      %s18 = sshll.u32 [#allocation3], 4
      %s19 = int_to_ptr.vmem [resolvable:$true] %s18
      %24 = dma.hbm_to_vmem [thread:$0]  %s17, 2048, %s19, [#allocation4], 128, 128, 8
    $region9: #{linear_cell_packed.1} parent=1 // pred_fallthru
      _
    // Predicated region
    $region10: #{linear_cell_packed.1} parent=1 // pred_check
      _
    $region11: #{linear_cell_packed.1} parent=1 // pred_check_branch
      %26 = sbr.rel (0) target = $region13
    $region12: #{linear_cell_packed.1} parent=1 // pred_region
      _
    $region13: #{linear_cell_packed.1} parent=1 // pred_fallthru
      _
    // Predicated region
    $region14: #{linear_cell_packed.1} parent=1 // pred_check
      _
    $region15: #{linear_cell_packed.1} parent=1 // pred_check_branch
      %28 = sbr.rel (0) target = $region17
    $region16: #{linear_cell_packed.1} parent=1 // pred_region
      %30 = dma.done [#allocation4], 2048
    $region17: #{linear_cell_packed.1} parent=1 // pred_fallthru
      _
    %p31 = scmp.eq.s32.totalorder 0, 0
    // Predicated region
    $region18: #{linear_cell_packed.1} parent=1 // pred_check
      %p32 = pneg %p31
    $region19: #{linear_cell_packed.1} parent=1 // pred_check_branch
      %34 = sbr.rel (%p32) target = $region21
    $region20: #{linear_cell_packed.1} parent=1 // pred_region
      %35 = vst [vmem:[#allocation2] sm:$0xff] 0.0
    $region21: #{linear_cell_packed.1} parent=1 // pred_fallthru
      _
    %v36 = vld [vmem:[#allocation2] sm:$0xff]
    %v37 = vld [vmem:[%s0] sm:$0xff]
    %v38 = vld [vmem:[#allocation3] sm:$0xff]
    %v39 = vld [vmem:[#allocation3 + $0x8] sm:$0xff]
    %v40 = vld [vmem:[#allocation3 + $0x10] sm:$0xff]
    %v41 = vld [vmem:[#allocation3 + $0x18] sm:$0xff]
    %v42 = vld [vmem:[#allocation3 + $0x20] sm:$0xff]
    %v43 = vld [vmem:[#allocation3 + $0x28] sm:$0xff]
    %v44 = vld [vmem:[#allocation3 + $0x30] sm:$0xff]
    %v45 = vld [vmem:[#allocation3 + $0x38] sm:$0xff]
    %v46 = vld [vmem:[#allocation3 + $0x40] sm:$0xff]
    %v47 = vld [vmem:[#allocation3 + $0x48] sm:$0xff]
    %v48 = vld [vmem:[#allocation3 + $0x50] sm:$0xff]
    %v49 = vld [vmem:[#allocation3 + $0x58] sm:$0xff]
    %v50 = vld [vmem:[#allocation3 + $0x60] sm:$0xff]
    %v51 = vld [vmem:[#allocation3 + $0x68] sm:$0xff]
    %v52 = vld [vmem:[#allocation3 + $0x70] sm:$0xff]
    %v53 = vld [vmem:[#allocation3 + $0x78] sm:$0xff]
    %54 = vmatpush.msra.mxu0 %v53
    %55 = vmatpush.msra.mxu0 %v52
    %56 = vmatpush.msra.mxu0 %v51
    %57 = vmatpush.msra.mxu0 %v50
    %58 = vmatpush.msra.mxu0 %v49
    %59 = vmatpush.msra.mxu0 %v48
    %60 = vmatpush.msra.mxu0 %v47
    %61 = vmatpush.msra.mxu0 %v46
    %62 = vmatpush.msra.mxu0 %v45
    %63 = vmatpush.msra.mxu0 %v44
    %64 = vmatpush.msra.mxu0 %v43
    %65 = vmatpush.msra.mxu0 %v42
    %66 = vmatpush.msra.mxu0 %v41
    %67 = vmatpush.msra.mxu0 %v40
    %68 = vmatpush.msra.mxu0 %v39
    %69 = vmatpush.msra.mxu0 %v38
    %70 = vmatmul.f32.gmra.mxu0 %v37
    %v71 = vpop.f32.mrf.mxu0
    %v72 = vadd.f32 0.0, %v71
    %73 = vdwg.mxu0
    %v74 = vadd.f32 %v36, %v72
    %75 = vst [vmem:[#allocation2] sm:$0xff] %v74
    // Predicated region
    $region22: #{linear_cell_packed.1} parent=1 // pred_check
      %p76 = pneg %p31
    $region23: #{linear_cell_packed.1} parent=1 // pred_check_branch
      %78 = sbr.rel (%p76) target = $region25
    $region24: #{linear_cell_packed.1} parent=1 // pred_region
      %v79 = vld [vmem:[#allocation2] sm:$0xff]
      %v80 = vld [vmem:[%s2] sm:$0x1]
      %v82 = vperm.slane %v80, 0
      %v84 = vadd.f32 %v79, %v82
      %85 = vst [vmem:[#allocation6] sm:$0xff] %v84
    $region25: #{linear_cell_packed.1} parent=1 // pred_fallthru
      _
    // Predicated region
    $region26: #{linear_cell_packed.1} parent=1 // pred_check
      _
    $region27: #{linear_cell_packed.1} parent=1 // pred_check_branch
      %87 = sbr.rel (0) target = $region29
    $region28: #{linear_cell_packed.1} parent=1 // pred_region
      %89 = vsyncadd [#allocation5], 0
      %s91 = sshll.u32 [#allocation6], 4
      %s92 = int_to_ptr.vmem [resolvable:$true] %s91
      %s93 = sshll.u32 %s3, 4
      %s94 = int_to_ptr.hbm [resolvable:$true] %s93
      %96 = dma.vmem_to_hbm [thread:$0]  %s92, 128, %s94, [#allocation5]
    $region29: #{linear_cell_packed.1} parent=1 // pred_fallthru
      _
    // Predicated region
    $region30: #{linear_cell_packed.1} parent=1 // pred_check
      _
    $region31: #{linear_cell_packed.1} parent=1 // pred_check_branch
      %98 = sbr.rel (0) target = $region33
    $region32: #{linear_cell_packed.1} parent=1 // pred_region
      %100 = dma.done [#allocation5], 128
    $region33: #{linear_cell_packed.1} parent=1 // pred_fallthru
      _
    %101 = vsyncpa [#allocation4], 1
    %102 = vsyncpa [#allocation5], 1

</llo_original>
